<compile_context>
chip_gen: v7x
topology: tpu7x:2x2x1
jax: 0.10.0
libtpu: 0.0.40
codegen_flags: <defaults>
</compile_context>

<pallas_src>
import jax
import jax.numpy as jnp
from jax.experimental import pallas as pl
from jax.experimental.pallas import tpu as pltpu

# --- constants implied by the PyTorch module -------------------------------
ECHO_TIME_INDEX = 0
REPETITION_TIME_INDEX = 1
INVERSION_TIME_INDEX = 2
T1W_MODALITY_ID = 0
T2W_MODALITY_ID = 1
FLAIR_MODALITY_ID = 2

_SUBLANE = 8
_LANE = 128
_PARAMS_PER_CONTRAST = 8  # te, tr, ti, gain, w_t1w, w_t2w, w_flair, pad


def _mr_signal_kernel(params_ref, q_ref, o_ref):
    """One grid point = (batch b, spatial tile t).

    params_ref : SMEM (B, 8*C) f32  -- [te, tr, ti, gain, w1, w2, w3, 0] per (b, c)
    q_ref      : VMEM (1, 3, TR, 128) -- log_pd / log_t1 / log_t2 tile of batch b
    o_ref      : VMEM (1, C, TR, 128) -- all C contrast planes for this tile
    """
    b = pl.program_id(0)

    # Per-batch work hoisted out of the contrast loop: 2 clips + 2 exps total.
    # Reciprocals via negated exponents -> no divide on this path.
    log_pd = q_ref[0, 0, :, :]
    inv_t1 = jnp.exp(-jnp.clip(q_ref[0, 1, :, :], -20.0, 30.0))  # == 1 / t1
    inv_t2 = jnp.exp(-jnp.clip(q_ref[0, 2, :, :], -20.0, 30.0))  # == 1 / t2

    num_contrasts = o_ref.shape[1]
    for c in range(num_contrasts):  # C is small -> fully unrolled
        base = _PARAMS_PER_CONTRAST * c
        te = params_ref[b, base + 0]
        tr = params_ref[b, base + 1]
        ti = params_ref[b, base + 2]
        gain = params_ref[b, base + 3]
        w_t1w = params_ref[b, base + 4]
        w_t2w = params_ref[b, base + 5]
        w_flair = params_ref[b, base + 6]

        e_ti_t1 = jnp.exp(-ti * inv_t1)
        e_tr_t1 = jnp.exp(-tr * inv_t1)

        # Exact divide kept for the MPRAGE denominator (approx reciprocal can
        # violate the 1e-5 verification tolerance).
        t1w_mprage = 1.0 - 2.0 * e_ti_t1 / (1.0 + e_tr_t1)
        t2w_spin_echo = 1.0 - e_tr_t1
        flair = 1.0 - 2.0 * e_ti_t1 + e_tr_t1

        # Per-contrast scalar one-hot weights; ids outside {0,1,2} give an
        # all-zero signal, matching the reference semantics.
        signal = t1w_mprage * w_t1w + t2w_spin_echo * w_t2w + flair * w_flair

        # Fused amplitude: exp(gain) * exp(log_pd) * exp(-te/t2) as ONE exp.
        o_ref[0, c, :, :] = jnp.exp(gain + log_pd - te * inv_t2) * signal


@jax.jit
def mr_signal_model(log_q_map, acq_params, modality_ids, log_scanner_gain):
    B, Q, H, W = log_q_map.shape
    assert Q >= 3
    C = acq_params.shape[1]

    # --- per-(b, c) scalar table, packed for SMEM (long axis last) ----------
    gain = jnp.broadcast_to(
        log_scanner_gain.astype(jnp.float32), (B, C, 1, 1)
    ).reshape(B, C)
    mods = modality_ids
    params = jnp.stack(
        [
            acq_params[:, :, ECHO_TIME_INDEX].astype(jnp.float32),
            acq_params[:, :, REPETITION_TIME_INDEX].astype(jnp.float32),
            acq_params[:, :, INVERSION_TIME_INDEX].astype(jnp.float32),
            gain,
            (mods == T1W_MODALITY_ID).astype(jnp.float32),
            (mods == T2W_MODALITY_ID).astype(jnp.float32),
            (mods == FLAIR_MODALITY_ID).astype(jnp.float32),
            jnp.zeros((B, C), jnp.float32),
        ],
        axis=-1,
    ).reshape(B, C * _PARAMS_PER_CONTRAST)

    # --- lane-dense spatial layout: flatten H*W into rows of 128 lanes ------
    L = H * W
    R = pl.cdiv(L, _LANE)                      # number of 128-wide rows
    R_up = -(-R // _SUBLANE) * _SUBLANE        # rows rounded up to sublane mult

    # Spatial tile height TR (multiple of 8), sized so the q + out tiles stay
    # within a ~6 MiB budget even when double-buffered (safe on all chips).
    bytes_per_row = (3 + C) * _LANE * 4
    budget = 6 << 20
    tr_cap = max(_SUBLANE, (budget // bytes_per_row) // _SUBLANE * _SUBLANE)
    TR = min(tr_cap, 1024, R_up)
    R_pad = -(-R // TR) * TR
    L_pad = R_pad * _LANE
    num_tiles = R_pad // TR

    q = log_q_map[:, :3].astype(jnp.float32).reshape(B, 3, L)
    q = jnp.pad(q, ((0, 0), (0, 0), (0, L_pad - L)))  # zero-pad: stays finite
    q = q.reshape(B, 3, R_pad, _LANE)

    q_tile_bytes = 3 * TR * _LANE * 4
    o_tile_bytes = C * TR * _LANE * 4
    vmem_limit = min(64 << 20, max(16 << 20, 4 * (q_tile_bytes + o_tile_bytes)))

    out = pl.pallas_call(
        _mr_signal_kernel,
        out_shape=jax.ShapeDtypeStruct((B, C, R_pad, _LANE), jnp.float32),
        grid_spec=pl.GridSpec(
            grid=(B, num_tiles),
            in_specs=[
                pl.BlockSpec(memory_space=pltpu.MemorySpace.SMEM),  # params
                pl.BlockSpec((1, 3, TR, _LANE), lambda b, t: (b, 0, t, 0)),
            ],
            out_specs=pl.BlockSpec((1, C, TR, _LANE), lambda b, t: (b, 0, t, 0)),
        ),
        compiler_params=pltpu.CompilerParams(
            dimension_semantics=("parallel", "parallel"),
            vmem_limit_bytes=vmem_limit,
        ),
        cost_estimate=pl.CostEstimate(
            flops=14 * B * C * L_pad,
            transcendentals=B * L_pad * (2 + 3 * C),
            bytes_accessed=4 * B * (3 + C) * L_pad,
        ),
    )(params, q)

    return out.reshape(B, C, L_pad)[:, :, :L].reshape(B, C, H, W)


def _reference(log_q_map, acq_params, modality_ids, log_scanner_gain):
    # plain-JAX replica of the PyTorch forward, for verification only
    log_pd = log_q_map[:, 0:1, :, :]
    log_t1_t2 = jnp.exp(jnp.clip(log_q_map[:, 1:3, :, :], -20.0, 30.0))
    t1 = log_t1_t2[:, 0:1, :, :]
    t2 = log_t1_t2[:, 1:2, :, :]
    te = acq_params[:, :, ECHO_TIME_INDEX][:, :, None, None]
    tr = acq_params[:, :, REPETITION_TIME_INDEX][:, :, None, None]
    ti = acq_params[:, :, INVERSION_TIME_INDEX][:, :, None, None]
    t1w_mask = (modality_ids == T1W_MODALITY_ID)[:, :, None, None]
    t2w_mask = (modality_ids == T2W_MODALITY_ID)[:, :, None, None]
    flair_mask = (modality_ids == FLAIR_MODALITY_ID)[:, :, None, None]
    t1w_mprage = 1 - 2 * jnp.exp(-ti / t1) / (1 + jnp.exp(-tr / t1))
    t2w_spin_echo = 1 - jnp.exp(-tr / t1)
    flair = 1 - 2 * jnp.exp(-ti / t1) + jnp.exp(-tr / t1)
    return (
        jnp.exp(log_scanner_gain + log_pd)
        * (t1w_mprage * t1w_mask + t2w_spin_echo * t2w_mask + flair * flair_mask)
        * jnp.exp(-te / t2)
    )


if __name__ == "__main__":
    B, Q, H, W = 2, 3, 16, 16  # batch, q-map channels, spatial
    C = 4  # contrasts / acquisitions per subject

    key = jax.random.PRNGKey(0)
    k0, k1, k2, k3 = jax.random.split(key, 4)

    log_q_map = jax.random.normal(k0, (B, Q, H, W), dtype=jnp.float32) * 0.5
    acq_params = jax.random.uniform(
        k1, (B, C, 3), dtype=jnp.float32, minval=0.1, maxval=3.0
    )
    modality_ids = jax.random.randint(k2, (B, C), 0, 3, dtype=jnp.int32)
    log_scanner_gain = (
        jax.random.normal(k3, (B, C, 1, 1), dtype=jnp.float32) * 0.1
    )

    out = mr_signal_model(log_q_map, acq_params, modality_ids, log_scanner_gain)
    out = jax.block_until_ready(out)

    ref = _reference(log_q_map, acq_params, modality_ids, log_scanner_gain)
    assert out.shape == (B, C, H, W), f"bad output shape {out.shape}"
    assert jnp.allclose(out, ref, rtol=1e-5, atol=1e-5), "mismatch vs reference"

    print("KERNEL_OK")
</pallas_src>

<mosaic_0001>
module attributes {stable_mosaic.version = 11 : i64} {
  func.func @_mr_signal_kernel(%arg0: i32, %arg1: i32, %arg2: memref<2x32xf32, #tpu.memory_space<smem>>, %arg3: memref<1x3x8x128xf32, #tpu.memory_space<vmem>>, %arg4: memref<1x4x8x128xf32, #tpu.memory_space<vmem>>) attributes {dimension_semantics = [#tpu.dimension_semantics<parallel>, #tpu.dimension_semantics<parallel>], iteration_bounds = array<i64: 2, 1>, scalar_prefetch = 0 : i64, scratch_operands = 0 : i64, tpu.core_type = #tpu.core_type<tc>, window_params = [{transform_indices = @transform_0, window_bounds = array<i64: 2, 32>}, {transform_indices = @transform_1, window_bounds = array<i64: 1, 3, 8, 128>}, {transform_indices = @transform_2, window_bounds = array<i64: 1, 4, 8, 128>}]} {
    %c0 = arith.constant 0 : index
    %c0_0 = arith.constant 0 : index
    %c0_1 = arith.constant 0 : index
    %c0_2 = arith.constant 0 : index
    %0 = vector.load %arg3[%c0, %c0_0, %c0_1, %c0_2] : memref<1x3x8x128xf32, #tpu.memory_space<vmem>>, vector<1x1x8x128xf32>
    %1 = vector.shape_cast %0 : vector<1x1x8x128xf32> to vector<8x128xf32>
    %c0_3 = arith.constant 0 : index
    %c1 = arith.constant 1 : index
    %c0_4 = arith.constant 0 : index
    %c0_5 = arith.constant 0 : index
    %2 = vector.load %arg3[%c0_3, %c1, %c0_4, %c0_5] : memref<1x3x8x128xf32, #tpu.memory_space<vmem>>, vector<1x1x8x128xf32>
    %3 = vector.shape_cast %2 : vector<1x1x8x128xf32> to vector<8x128xf32>
    %cst = arith.constant -2.000000e+01 : f32
    %cst_6 = arith.constant 3.000000e+01 : f32
    %4 = vector.broadcast %cst : f32 to vector<8x128xf32>
    %5 = arith.maximumf %4, %3 : vector<8x128xf32>
    %6 = vector.broadcast %cst_6 : f32 to vector<8x128xf32>
    %7 = arith.minimumf %6, %5 : vector<8x128xf32>
    %cst_7 = arith.constant 0.000000e+00 : f32
    %8 = vector.broadcast %cst_7 : f32 to vector<8x128xf32>
    %9 = arith.subf %8, %7 : vector<8x128xf32>
    %10 = math.exp %9 : vector<8x128xf32>
    %c0_8 = arith.constant 0 : index
    %c2 = arith.constant 2 : index
    %c0_9 = arith.constant 0 : index
    %c0_10 = arith.constant 0 : index
    %11 = vector.load %arg3[%c0_8, %c2, %c0_9, %c0_10] : memref<1x3x8x128xf32, #tpu.memory_space<vmem>>, vector<1x1x8x128xf32>
    %12 = vector.shape_cast %11 : vector<1x1x8x128xf32> to vector<8x128xf32>
    %cst_11 = arith.constant -2.000000e+01 : f32
    %cst_12 = arith.constant 3.000000e+01 : f32
    %13 = vector.broadcast %cst_11 : f32 to vector<8x128xf32>
    %14 = arith.maximumf %13, %12 : vector<8x128xf32>
    %15 = vector.broadcast %cst_12 : f32 to vector<8x128xf32>
    %16 = arith.minimumf %15, %14 : vector<8x128xf32>
    %cst_13 = arith.constant 0.000000e+00 : f32
    %17 = vector.broadcast %cst_13 : f32 to vector<8x128xf32>
    %18 = arith.subf %17, %16 : vector<8x128xf32>
    %19 = math.exp %18 : vector<8x128xf32>
    %20 = arith.index_cast %arg0 : i32 to index
    %c0_14 = arith.constant 0 : index
    %21 = memref.load %arg2[%20, %c0_14] : memref<2x32xf32, #tpu.memory_space<smem>>
    %22 = arith.index_cast %arg0 : i32 to index
    %c1_15 = arith.constant 1 : index
    %23 = memref.load %arg2[%22, %c1_15] : memref<2x32xf32, #tpu.memory_space<smem>>
    %24 = arith.index_cast %arg0 : i32 to index
    %c2_16 = arith.constant 2 : index
    %25 = memref.load %arg2[%24, %c2_16] : memref<2x32xf32, #tpu.memory_space<smem>>
    %26 = arith.index_cast %arg0 : i32 to index
    %c3 = arith.constant 3 : index
    %27 = memref.load %arg2[%26, %c3] : memref<2x32xf32, #tpu.memory_space<smem>>
    %28 = arith.index_cast %arg0 : i32 to index
    %c4 = arith.constant 4 : index
    %29 = memref.load %arg2[%28, %c4] : memref<2x32xf32, #tpu.memory_space<smem>>
    %30 = arith.index_cast %arg0 : i32 to index
    %c5 = arith.constant 5 : index
    %31 = memref.load %arg2[%30, %c5] : memref<2x32xf32, #tpu.memory_space<smem>>
    %32 = arith.index_cast %arg0 : i32 to index
    %c6 = arith.constant 6 : index
    %33 = memref.load %arg2[%32, %c6] : memref<2x32xf32, #tpu.memory_space<smem>>
    %cst_17 = arith.constant 0.000000e+00 : f32
    %34 = arith.subf %cst_17, %25 : f32
    %35 = vector.broadcast %34 : f32 to vector<8x128xf32>
    %36 = arith.mulf %35, %10 : vector<8x128xf32>
    %37 = math.exp %36 : vector<8x128xf32>
    %cst_18 = arith.constant 0.000000e+00 : f32
    %38 = arith.subf %cst_18, %23 : f32
    %39 = vector.broadcast %38 : f32 to vector<8x128xf32>
    %40 = arith.mulf %39, %10 : vector<8x128xf32>
    %41 = math.exp %40 : vector<8x128xf32>
    %cst_19 = arith.constant 2.000000e+00 : f32
    %42 = vector.broadcast %cst_19 : f32 to vector<8x128xf32>
    %43 = arith.mulf %42, %37 : vector<8x128xf32>
    %cst_20 = arith.constant 1.000000e+00 : f32
    %44 = vector.broadcast %cst_20 : f32 to vector<8x128xf32>
    %45 = arith.addf %44, %41 : vector<8x128xf32>
    %46 = arith.divf %43, %45 : vector<8x128xf32>
    %cst_21 = arith.constant 1.000000e+00 : f32
    %47 = vector.broadcast %cst_21 : f32 to vector<8x128xf32>
    %48 = arith.subf %47, %46 : vector<8x128xf32>
    %cst_22 = arith.constant 1.000000e+00 : f32
    %49 = vector.broadcast %cst_22 : f32 to vector<8x128xf32>
    %50 = arith.subf %49, %41 : vector<8x128xf32>
    %cst_23 = arith.constant 2.000000e+00 : f32
    %51 = vector.broadcast %cst_23 : f32 to vector<8x128xf32>
    %52 = arith.mulf %51, %37 : vector<8x128xf32>
    %cst_24 = arith.constant 1.000000e+00 : f32
    %53 = vector.broadcast %cst_24 : f32 to vector<8x128xf32>
    %54 = arith.subf %53, %52 : vector<8x128xf32>
    %55 = arith.addf %54, %41 : vector<8x128xf32>
    %56 = vector.broadcast %29 : f32 to vector<8x128xf32>
    %57 = arith.mulf %48, %56 : vector<8x128xf32>
    %58 = vector.broadcast %31 : f32 to vector<8x128xf32>
    %59 = arith.mulf %50, %58 : vector<8x128xf32>
    %60 = arith.addf %57, %59 : vector<8x128xf32>
    %61 = vector.broadcast %33 : f32 to vector<8x128xf32>
    %62 = arith.mulf %55, %61 : vector<8x128xf32>
    %63 = arith.addf %60, %62 : vector<8x128xf32>
    %64 = vector.broadcast %27 : f32 to vector<8x128xf32>
    %65 = arith.addf %64, %1 : vector<8x128xf32>
    %66 = vector.broadcast %21 : f32 to vector<8x128xf32>
    %67 = arith.mulf %66, %19 : vector<8x128xf32>
    %68 = arith.subf %65, %67 : vector<8x128xf32>
    %69 = math.exp %68 : vector<8x128xf32>
    %70 = arith.mulf %69, %63 : vector<8x128xf32>
    %c0_25 = arith.constant 0 : index
    %c0_26 = arith.constant 0 : index
    %c0_27 = arith.constant 0 : index
    %c0_28 = arith.constant 0 : index
    %71 = vector.load %arg4[%c0_25, %c0_26, %c0_27, %c0_28] : memref<1x4x8x128xf32, #tpu.memory_space<vmem>>, vector<1x1x8x128xf32>
    %72 = vector.shape_cast %71 : vector<1x1x8x128xf32> to vector<8x128xf32>
    %73 = vector.shape_cast %70 : vector<8x128xf32> to vector<1x1x8x128xf32>
    tpu.vector_store %arg4[%c0_25, %c0_26, %c0_27, %c0_28], %73 {strides = array<i32>} : memref<1x4x8x128xf32, #tpu.memory_space<vmem>>, vector<1x1x8x128xf32>,
    %74 = arith.index_cast %arg0 : i32 to index
    %c8 = arith.constant 8 : index
    %75 = memref.load %arg2[%74, %c8] : memref<2x32xf32, #tpu.memory_space<smem>>
    %76 = arith.index_cast %arg0 : i32 to index
    %c9 = arith.constant 9 : index
    %77 = memref.load %arg2[%76, %c9] : memref<2x32xf32, #tpu.memory_space<smem>>
    %78 = arith.index_cast %arg0 : i32 to index
    %c10 = arith.constant 10 : index
    %79 = memref.load %arg2[%78, %c10] : memref<2x32xf32, #tpu.memory_space<smem>>
    %80 = arith.index_cast %arg0 : i32 to index
    %c11 = arith.constant 11 : index
    %81 = memref.load %arg2[%80, %c11] : memref<2x32xf32, #tpu.memory_space<smem>>
    %82 = arith.index_cast %arg0 : i32 to index
    %c12 = arith.constant 12 : index
    %83 = memref.load %arg2[%82, %c12] : memref<2x32xf32, #tpu.memory_space<smem>>
    %84 = arith.index_cast %arg0 : i32 to index
    %c13 = arith.constant 13 : index
    %85 = memref.load %arg2[%84, %c13] : memref<2x32xf32, #tpu.memory_space<smem>>
    %86 = arith.index_cast %arg0 : i32 to index
    %c14 = arith.constant 14 : index
    %87 = memref.load %arg2[%86, %c14] : memref<2x32xf32, #tpu.memory_space<smem>>
    %cst_29 = arith.constant 0.000000e+00 : f32
    %88 = arith.subf %cst_29, %79 : f32
    %89 = vector.broadcast %88 : f32 to vector<8x128xf32>
    %90 = arith.mulf %89, %10 : vector<8x128xf32>
    %91 = math.exp %90 : vector<8x128xf32>
    %cst_30 = arith.constant 0.000000e+00 : f32
    %92 = arith.subf %cst_30, %77 : f32
    %93 = vector.broadcast %92 : f32 to vector<8x128xf32>
    %94 = arith.mulf %93, %10 : vector<8x128xf32>
    %95 = math.exp %94 : vector<8x128xf32>
    %cst_31 = arith.constant 2.000000e+00 : f32
    %96 = vector.broadcast %cst_31 : f32 to vector<8x128xf32>
    %97 = arith.mulf %96, %91 : vector<8x128xf32>
    %cst_32 = arith.constant 1.000000e+00 : f32
    %98 = vector.broadcast %cst_32 : f32 to vector<8x128xf32>
    %99 = arith.addf %98, %95 : vector<8x128xf32>
    %100 = arith.divf %97, %99 : vector<8x128xf32>
    %cst_33 = arith.constant 1.000000e+00 : f32
    %101 = vector.broadcast %cst_33 : f32 to vector<8x128xf32>
    %102 = arith.subf %101, %100 : vector<8x128xf32>
    %cst_34 = arith.constant 1.000000e+00 : f32
    %103 = vector.broadcast %cst_34 : f32 to vector<8x128xf32>
    %104 = arith.subf %103, %95 : vector<8x128xf32>
    %cst_35 = arith.constant 2.000000e+00 : f32
    %105 = vector.broadcast %cst_35 : f32 to vector<8x128xf32>
    %106 = arith.mulf %105, %91 : vector<8x128xf32>
    %cst_36 = arith.constant 1.000000e+00 : f32
    %107 = vector.broadcast %cst_36 : f32 to vector<8x128xf32>
    %108 = arith.subf %107, %106 : vector<8x128xf32>
    %109 = arith.addf %108, %95 : vector<8x128xf32>
    %110 = vector.broadcast %83 : f32 to vector<8x128xf32>
    %111 = arith.mulf %102, %110 : vector<8x128xf32>
    %112 = vector.broadcast %85 : f32 to vector<8x128xf32>
    %113 = arith.mulf %104, %112 : vector<8x128xf32>
    %114 = arith.addf %111, %113 : vector<8x128xf32>
    %115 = vector.broadcast %87 : f32 to vector<8x128xf32>
    %116 = arith.mulf %109, %115 : vector<8x128xf32>
    %117 = arith.addf %114, %116 : vector<8x128xf32>
    %118 = vector.broadcast %81 : f32 to vector<8x128xf32>
    %119 = arith.addf %118, %1 : vector<8x128xf32>
    %120 = vector.broadcast %75 : f32 to vector<8x128xf32>
    %121 = arith.mulf %120, %19 : vector<8x128xf32>
    %122 = arith.subf %119, %121 : vector<8x128xf32>
    %123 = math.exp %122 : vector<8x128xf32>
    %124 = arith.mulf %123, %117 : vector<8x128xf32>
    %c0_37 = arith.constant 0 : index
    %c1_38 = arith.constant 1 : index
    %c0_39 = arith.constant 0 : index
    %c0_40 = arith.constant 0 : index
    %125 = vector.load %arg4[%c0_37, %c1_38, %c0_39, %c0_40] : memref<1x4x8x128xf32, #tpu.memory_space<vmem>>, vector<1x1x8x128xf32>
    %126 = vector.shape_cast %125 : vector<1x1x8x128xf32> to vector<8x128xf32>
    %127 = vector.shape_cast %124 : vector<8x128xf32> to vector<1x1x8x128xf32>
    tpu.vector_store %arg4[%c0_37, %c1_38, %c0_39, %c0_40], %127 {strides = array<i32>} : memref<1x4x8x128xf32, #tpu.memory_space<vmem>>, vector<1x1x8x128xf32>,
    %128 = arith.index_cast %arg0 : i32 to index
    %c16 = arith.constant 16 : index
    %129 = memref.load %arg2[%128, %c16] : memref<2x32xf32, #tpu.memory_space<smem>>
    %130 = arith.index_cast %arg0 : i32 to index
    %c17 = arith.constant 17 : index
    %131 = memref.load %arg2[%130, %c17] : memref<2x32xf32, #tpu.memory_space<smem>>
    %132 = arith.index_cast %arg0 : i32 to index
    %c18 = arith.constant 18 : index
    %133 = memref.load %arg2[%132, %c18] : memref<2x32xf32, #tpu.memory_space<smem>>
    %134 = arith.index_cast %arg0 : i32 to index
    %c19 = arith.constant 19 : index
    %135 = memref.load %arg2[%134, %c19] : memref<2x32xf32, #tpu.memory_space<smem>>
    %136 = arith.index_cast %arg0 : i32 to index
    %c20 = arith.constant 20 : index
    %137 = memref.load %arg2[%136, %c20] : memref<2x32xf32, #tpu.memory_space<smem>>
    %138 = arith.index_cast %arg0 : i32 to index
    %c21 = arith.constant 21 : index
    %139 = memref.load %arg2[%138, %c21] : memref<2x32xf32, #tpu.memory_space<smem>>
    %140 = arith.index_cast %arg0 : i32 to index
    %c22 = arith.constant 22 : index
    %141 = memref.load %arg2[%140, %c22] : memref<2x32xf32, #tpu.memory_space<smem>>
    %cst_41 = arith.constant 0.000000e+00 : f32
    %142 = arith.subf %cst_41, %133 : f32
    %143 = vector.broadcast %142 : f32 to vector<8x128xf32>
    %144 = arith.mulf %143, %10 : vector<8x128xf32>
    %145 = math.exp %144 : vector<8x128xf32>
    %cst_42 = arith.constant 0.000000e+00 : f32
    %146 = arith.subf %cst_42, %131 : f32
    %147 = vector.broadcast %146 : f32 to vector<8x128xf32>
    %148 = arith.mulf %147, %10 : vector<8x128xf32>
    %149 = math.exp %148 : vector<8x128xf32>
    %cst_43 = arith.constant 2.000000e+00 : f32
    %150 = vector.broadcast %cst_43 : f32 to vector<8x128xf32>
    %151 = arith.mulf %150, %145 : vector<8x128xf32>
    %cst_44 = arith.constant 1.000000e+00 : f32
    %152 = vector.broadcast %cst_44 : f32 to vector<8x128xf32>
    %153 = arith.addf %152, %149 : vector<8x128xf32>
    %154 = arith.divf %151, %153 : vector<8x128xf32>
    %cst_45 = arith.constant 1.000000e+00 : f32
    %155 = vector.broadcast %cst_45 : f32 to vector<8x128xf32>
    %156 = arith.subf %155, %154 : vector<8x128xf32>
    %cst_46 = arith.constant 1.000000e+00 : f32
    %157 = vector.broadcast %cst_46 : f32 to vector<8x128xf32>
    %158 = arith.subf %157, %149 : vector<8x128xf32>
    %cst_47 = arith.constant 2.000000e+00 : f32
    %159 = vector.broadcast %cst_47 : f32 to vector<8x128xf32>
    %160 = arith.mulf %159, %145 : vector<8x128xf32>
    %cst_48 = arith.constant 1.000000e+00 : f32
    %161 = vector.broadcast %cst_48 : f32 to vector<8x128xf32>
    %162 = arith.subf %161, %160 : vector<8x128xf32>
    %163 = arith.addf %162, %149 : vector<8x128xf32>
    %164 = vector.broadcast %137 : f32 to vector<8x128xf32>
    %165 = arith.mulf %156, %164 : vector<8x128xf32>
    %166 = vector.broadcast %139 : f32 to vector<8x128xf32>
    %167 = arith.mulf %158, %166 : vector<8x128xf32>
    %168 = arith.addf %165, %167 : vector<8x128xf32>
    %169 = vector.broadcast %141 : f32 to vector<8x128xf32>
    %170 = arith.mulf %163, %169 : vector<8x128xf32>
    %171 = arith.addf %168, %170 : vector<8x128xf32>
    %172 = vector.broadcast %135 : f32 to vector<8x128xf32>
    %173 = arith.addf %172, %1 : vector<8x128xf32>
    %174 = vector.broadcast %129 : f32 to vector<8x128xf32>
    %175 = arith.mulf %174, %19 : vector<8x128xf32>
    %176 = arith.subf %173, %175 : vector<8x128xf32>
    %177 = math.exp %176 : vector<8x128xf32>
    %178 = arith.mulf %177, %171 : vector<8x128xf32>
    %c0_49 = arith.constant 0 : index
    %c2_50 = arith.constant 2 : index
    %c0_51 = arith.constant 0 : index
    %c0_52 = arith.constant 0 : index
    %179 = vector.load %arg4[%c0_49, %c2_50, %c0_51, %c0_52] : memref<1x4x8x128xf32, #tpu.memory_space<vmem>>, vector<1x1x8x128xf32>
    %180 = vector.shape_cast %179 : vector<1x1x8x128xf32> to vector<8x128xf32>
    %181 = vector.shape_cast %178 : vector<8x128xf32> to vector<1x1x8x128xf32>
    tpu.vector_store %arg4[%c0_49, %c2_50, %c0_51, %c0_52], %181 {strides = array<i32>} : memref<1x4x8x128xf32, #tpu.memory_space<vmem>>, vector<1x1x8x128xf32>,
    %182 = arith.index_cast %arg0 : i32 to index
    %c24 = arith.constant 24 : index
    %183 = memref.load %arg2[%182, %c24] : memref<2x32xf32, #tpu.memory_space<smem>>
    %184 = arith.index_cast %arg0 : i32 to index
    %c25 = arith.constant 25 : index
    %185 = memref.load %arg2[%184, %c25] : memref<2x32xf32, #tpu.memory_space<smem>>
    %186 = arith.index_cast %arg0 : i32 to index
    %c26 = arith.constant 26 : index
    %187 = memref.load %arg2[%186, %c26] : memref<2x32xf32, #tpu.memory_space<smem>>
    %188 = arith.index_cast %arg0 : i32 to index
    %c27 = arith.constant 27 : index
    %189 = memref.load %arg2[%188, %c27] : memref<2x32xf32, #tpu.memory_space<smem>>
    %190 = arith.index_cast %arg0 : i32 to index
    %c28 = arith.constant 28 : index
    %191 = memref.load %arg2[%190, %c28] : memref<2x32xf32, #tpu.memory_space<smem>>
    %192 = arith.index_cast %arg0 : i32 to index
    %c29 = arith.constant 29 : index
    %193 = memref.load %arg2[%192, %c29] : memref<2x32xf32, #tpu.memory_space<smem>>
    %194 = arith.index_cast %arg0 : i32 to index
    %c30 = arith.constant 30 : index
    %195 = memref.load %arg2[%194, %c30] : memref<2x32xf32, #tpu.memory_space<smem>>
    %cst_53 = arith.constant 0.000000e+00 : f32
    %196 = arith.subf %cst_53, %187 : f32
    %197 = vector.broadcast %196 : f32 to vector<8x128xf32>
    %198 = arith.mulf %197, %10 : vector<8x128xf32>
    %199 = math.exp %198 : vector<8x128xf32>
    %cst_54 = arith.constant 0.000000e+00 : f32
    %200 = arith.subf %cst_54, %185 : f32
    %201 = vector.broadcast %200 : f32 to vector<8x128xf32>
    %202 = arith.mulf %201, %10 : vector<8x128xf32>
    %203 = math.exp %202 : vector<8x128xf32>
    %cst_55 = arith.constant 2.000000e+00 : f32
    %204 = vector.broadcast %cst_55 : f32 to vector<8x128xf32>
    %205 = arith.mulf %204, %199 : vector<8x128xf32>
    %cst_56 = arith.constant 1.000000e+00 : f32
    %206 = vector.broadcast %cst_56 : f32 to vector<8x128xf32>
    %207 = arith.addf %206, %203 : vector<8x128xf32>
    %208 = arith.divf %205, %207 : vector<8x128xf32>
    %cst_57 = arith.constant 1.000000e+00 : f32
    %209 = vector.broadcast %cst_57 : f32 to vector<8x128xf32>
    %210 = arith.subf %209, %208 : vector<8x128xf32>
    %cst_58 = arith.constant 1.000000e+00 : f32
    %211 = vector.broadcast %cst_58 : f32 to vector<8x128xf32>
    %212 = arith.subf %211, %203 : vector<8x128xf32>
    %cst_59 = arith.constant 2.000000e+00 : f32
    %213 = vector.broadcast %cst_59 : f32 to vector<8x128xf32>
    %214 = arith.mulf %213, %199 : vector<8x128xf32>
    %cst_60 = arith.constant 1.000000e+00 : f32
    %215 = vector.broadcast %cst_60 : f32 to vector<8x128xf32>
    %216 = arith.subf %215, %214 : vector<8x128xf32>
    %217 = arith.addf %216, %203 : vector<8x128xf32>
    %218 = vector.broadcast %191 : f32 to vector<8x128xf32>
    %219 = arith.mulf %210, %218 : vector<8x128xf32>
    %220 = vector.broadcast %193 : f32 to vector<8x128xf32>
    %221 = arith.mulf %212, %220 : vector<8x128xf32>
    %222 = arith.addf %219, %221 : vector<8x128xf32>
    %223 = vector.broadcast %195 : f32 to vector<8x128xf32>
    %224 = arith.mulf %217, %223 : vector<8x128xf32>
    %225 = arith.addf %222, %224 : vector<8x128xf32>
    %226 = vector.broadcast %189 : f32 to vector<8x128xf32>
    %227 = arith.addf %226, %1 : vector<8x128xf32>
    %228 = vector.broadcast %183 : f32 to vector<8x128xf32>
    %229 = arith.mulf %228, %19 : vector<8x128xf32>
    %230 = arith.subf %227, %229 : vector<8x128xf32>
    %231 = math.exp %230 : vector<8x128xf32>
    %232 = arith.mulf %231, %225 : vector<8x128xf32>
    %c0_61 = arith.constant 0 : index
    %c3_62 = arith.constant 3 : index
    %c0_63 = arith.constant 0 : index
    %c0_64 = arith.constant 0 : index
    %233 = vector.load %arg4[%c0_61, %c3_62, %c0_63, %c0_64] : memref<1x4x8x128xf32, #tpu.memory_space<vmem>>, vector<1x1x8x128xf32>
    %234 = vector.shape_cast %233 : vector<1x1x8x128xf32> to vector<8x128xf32>
    %235 = vector.shape_cast %232 : vector<8x128xf32> to vector<1x1x8x128xf32>
    tpu.vector_store %arg4[%c0_61, %c3_62, %c0_63, %c0_64], %235 {strides = array<i32>} : memref<1x4x8x128xf32, #tpu.memory_space<vmem>>, vector<1x1x8x128xf32>,
    return
  }
  func.func @transform_0(%arg0: i32, %arg1: i32) -> (i32, i32) {
    %c0_i32 = arith.constant 0 : i32
    %c0_i32_0 = arith.constant 0 : i32
    %c0_i32_1 = arith.constant 0 : i32
    return %c0_i32, %c0_i32_0 : i32, i32
  }
  func.func @transform_1(%arg0: i32, %arg1: i32) -> (i32, i32, i32, i32) {
    %c0_i32 = arith.constant 0 : i32
    %c0_i32_0 = arith.constant 0 : i32
    %c0_i32_1 = arith.constant 0 : i32
    return %arg0, %c0_i32, %arg1, %c0_i32_0 : i32, i32, i32, i32
  }
  func.func @transform_2(%arg0: i32, %arg1: i32) -> (i32, i32, i32, i32) {
    %c0_i32 = arith.constant 0 : i32
    %c0_i32_0 = arith.constant 0 : i32
    %c0_i32_1 = arith.constant 0 : i32
    return %arg0, %c0_i32, %arg1, %c0_i32_0 : i32, i32, i32, i32
  }
}

</mosaic_0001>

<llo_original>
// kernel: mr_signal_model.1
$region0: #{mr_signal_model.1}
  #allocation0 [shape = 'u32[]', space=smem, size = 0x4, offset = 0x4, fixed_abs, tag = 'smem constant byte address 0x4 - core index']
  #allocation1 [shape = 'u32[144,128]{1,0:T(1,128)}', space=vmem, size = 0x12000, scoped, tag = 'internal scratch']
  %s0 = inlined_call_operand.vmem [shape: f32[2,32], index: 0, kind: input, shape index: {}]
  %s1 = inlined_call_operand.vmem [shape: f32[2,3,8,128], index: 1, kind: input, shape index: {}]
  %s2 = inlined_call_operand.vmem [shape: f32[2,4,8,128], index: 2, kind: output, shape index: {}]
  %s3 = sld [smem:[#allocation0]]
  $region45: #{mr_signal_model.1} parent=0
    _
  %s5 = ssub.s32 1, %s3
  %s6 = scalar_select 0, %s5, %s3
  $region1: #{mr_signal_model.1} parent=0
    #allocation2 [shape = 'u8[1024]{0}', space=smem, size = 0x400, scoped, tag = 'input window, operand 0, single buffered']
    #allocation3 [shape = 's32[2]{0}', space=sflag, size = 0x8, scoped, tag = 'scoped memory for mr_signal_model.1']
    %7 = vsyncpa [#allocation3], 0
    loop: start=0, step=1, limit=4
    $region2: #{mr_signal_model.1} parent=1 // loop_pre_header
      _
    $region3: #{mr_signal_model.1} parent=1 // loop_header
      %s9 = sphi 0, %s13
      %p10 = scmp.ge.s32.totalorder %s9, 4
      %s16 = sphi 0, %s28
      %s17 = sphi 0, %s24
      %s18 = sphi 0, %s16
      %s19 = sphi 0, %s17
      %s20 = sphi 0, %s18
      %s21 = sphi 0, %s19
      %s29 = sphi 0, %s29
      %s31 = sphi 0, %s29
      %s32 = sphi 0, %s31
      %s46 = sphi 0, %s32
      %s54 = sphi 0, %s56
      %s57 = sphi 0, %s54
      %s58 = sphi 0, %s57
      %s74 = sphi 0, %s58
      %s82 = sphi 0, %s84
      %s85 = sphi 0, %s82
      %s86 = sphi 0, %s85
      %s102 = sphi 0, %s86
    $region4: #{mr_signal_model.1} parent=1 // loop_header_branch
      %12 = sbr.rel (%p10) target = $region8
    $region5: #{mr_signal_model.1} parent=1 // loop_body
      %s14 = ssub.s32 %s9, 1
      %s15 = ssub.s32 %s9, 2
      %s22 = sadd.s32 1, %s17
      %p23 = scmp.ge.s32.totalorder %s22, 1
      %s24 = scalar_select %p23, 0, %s22
      %s25 = sadd.s32 1, %s16
      %s26 = scalar_select %p23, %s25, %s16
      %p27 = scmp.ge.s32.totalorder %s26, 2
      %s28 = scalar_select %p27, 0, %s26
      %s30 = sadd.s32 %s29, 1
      %p33 = scmp.eq.s32.totalorder %s9, 1
      %p34 = scmp.ne.s32.totalorder %s29, %s31
      %p35 = scmp.eq.s32.totalorder %s9, 0
      %p36 = por %p34, %p35
      %p37 = scmp.ne.s32.totalorder %s29, %s31
      %p38 = scmp.eq.s32.totalorder %s14, 1
      %p39 = por %p37, %p38
      %p40 = scmp.ne.s32.totalorder %s31, %s32
      %p41 = scmp.eq.s32.totalorder %s14, 0
      %p42 = por %p40, %p41
      %p43 = scmp.ne.s32.totalorder %s31, %s32
      %p44 = scmp.eq.s32.totalorder %s15, 1
      %p45 = por %p43, %p44
      %p47 = scmp.ne.s32.totalorder %s32, %s46
      %p48 = scmp.eq.s32.totalorder %s15, 0
      %p49 = por %p47, %p48
      %s50 = ssub.s32 %s16, %s28
      %s51 = ssub.s32 %s17, %s24
      %s52 = sor.u32 %s50, %s51
      %p53 = scmp.eq.s32.totalorder %s52, 0
      %s55 = sadd.s32 %s54, 1
      %s56 = scalar_select %p53, %s54, %s55
      %p59 = pneg %p53
      %p60 = scmp.eq.s32.totalorder %s9, 1
      %p61 = por %p59, %p60
      %p62 = scmp.ne.s32.totalorder %s54, %s57
      %p63 = scmp.eq.s32.totalorder %s9, 0
      %p64 = por %p62, %p63
      %p65 = scmp.ne.s32.totalorder %s54, %s57
      %p66 = scmp.eq.s32.totalorder %s14, 1
      %p67 = por %p65, %p66
      %p68 = scmp.ne.s32.totalorder %s57, %s58
      %p69 = scmp.eq.s32.totalorder %s14, 0
      %p70 = por %p68, %p69
      %p71 = scmp.ne.s32.totalorder %s57, %s58
      %p72 = scmp.eq.s32.totalorder %s15, 1
      %p73 = por %p71, %p72
      %p75 = scmp.ne.s32.totalorder %s58, %s74
      %p76 = scmp.eq.s32.totalorder %s15, 0
      %p77 = por %p75, %p76
      %s78 = ssub.s32 %s16, %s28
      %s79 = ssub.s32 %s17, %s24
      %s80 = sor.u32 %s78, %s79
      %p81 = scmp.eq.s32.totalorder %s80, 0
      %s83 = sadd.s32 %s82, 1
      %s84 = scalar_select %p81, %s82, %s83
      %p87 = pneg %p81
      %p88 = scmp.eq.s32.totalorder %s9, 1
      %p89 = por %p87, %p88
      %p90 = scmp.ne.s32.totalorder %s82, %s85
      %p91 = scmp.eq.s32.totalorder %s9, 0
      %p92 = por %p90, %p91
      %p93 = scmp.ne.s32.totalorder %s82, %s85
      %p94 = scmp.eq.s32.totalorder %s14, 1
      %p95 = por %p93, %p94
      %p96 = scmp.ne.s32.totalorder %s85, %s86
      %p97 = scmp.eq.s32.totalorder %s14, 0
      %p98 = por %p96, %p97
      %p99 = scmp.ne.s32.totalorder %s85, %s86
      %p100 = scmp.eq.s32.totalorder %s15, 1
      %p101 = por %p99, %p100
      %p103 = scmp.ne.s32.totalorder %s86, %s102
      %p104 = scmp.eq.s32.totalorder %s15, 0
      %p105 = por %p103, %p104
      %p106 = scmp.le.s32.totalorder 1, %s9
      %p107 = scmp.lt.s32.totalorder %s9, 3
      %p108 = pnand %p106, %p107
      %p109 = pneg %p108
      // Predicated region
      $region9: #{mr_signal_model.1} parent=5 // pred_check
        _
      $region10: #{mr_signal_model.1} parent=5 // pred_check_branch
        %111 = sbr.rel (%p108) target = $region12
      $region11: #{mr_signal_model.1} parent=5 // pred_region
        %s112 = ssub.s32 %s9, 1
        // Predicated region
        $region13: #{mr_signal_model.1} parent=11 // pred_check
          %p113 = pneg %p42
        $region14: #{mr_signal_model.1} parent=11 // pred_check_branch
          %115 = sbr.rel (%p113) target = $region16
        $region15: #{mr_signal_model.1} parent=11 // pred_region
          %s117 = ssub.s32 32, 32
          %118 = vsyncadd [#allocation3], %s117
          %s120 = sshll.u32 %s0, 4
          %s121 = int_to_ptr.vmem [resolvable:$true] %s120
          %123 = dma.vmem_to_smem %s121, 32, [#allocation2], [#allocation3]
        $region16: #{mr_signal_model.1} parent=11 // pred_fallthru
          _
      $region12: #{mr_signal_model.1} parent=5 // pred_fallthru
        _
      %p124 = scmp.lt.s32.totalorder %s9, 2
      // Predicated region
      $region17: #{mr_signal_model.1} parent=5 // pred_check
        %p125 = pneg %p124
      $region18: #{mr_signal_model.1} parent=5 // pred_check_branch
        %127 = sbr.rel (%p125) target = $region20
      $region19: #{mr_signal_model.1} parent=5 // pred_region
        // Predicated region
        $region21: #{mr_signal_model.1} parent=19 // pred_check
          %p128 = pneg %p64
        $region22: #{mr_signal_model.1} parent=19 // pred_check_branch
          %130 = sbr.rel (%p128) target = $region24
        $region23: #{mr_signal_model.1} parent=19 // pred_region
          %p131 = scmp.lt.s32.totalorder %s16, 1
          %s132 = scalar_select %p131, %s16, 1
          %p133 = scmp.lt.s32.totalorder %s17, 0
          %s134 = scalar_select %p133, %s17, 0
          %s135 = smul.addr %s132, 3
          %s136 = sadd.s32 %s134, %s135
          %s137 = smul.addr %s136, 8
          %s138 = scalar_lea.vmem %s1, %s137
        $region24: #{mr_signal_model.1} parent=19 // pred_fallthru
          _
      $region20: #{mr_signal_model.1} parent=5 // pred_fallthru
        _
      %p139 = scmp.le.s32.totalorder 1, %s9
      %p140 = scmp.lt.s32.totalorder %s9, 3
      %p141 = pnand %p139, %p140
      %p142 = pneg %p141
      // Predicated region
      $region25: #{mr_signal_model.1} parent=5 // pred_check
        _
      $region26: #{mr_signal_model.1} parent=5 // pred_check_branch
        %144 = sbr.rel (%p141) target = $region28
      $region27: #{mr_signal_model.1} parent=5 // pred_region
        %s145 = ssub.s32 %s9, 1
        // Predicated region
        $region29: #{mr_signal_model.1} parent=27 // pred_check
          %p146 = pneg %p42
        $region30: #{mr_signal_model.1} parent=27 // pred_check_branch
          %148 = sbr.rel (%p146) target = $region32
        $region31: #{mr_signal_model.1} parent=27 // pred_region
          %149 = dma.done [#allocation3], 32
        $region32: #{mr_signal_model.1} parent=27 // pred_fallthru
          _
        %150 = sfence
        %p151 = pneg %p42
        %p152 = pneg %p39
        %p153 = scmp.lt.s32.totalorder %s18, 1
        %s154 = scalar_select %p153, %s18, 1
        %p155 = scmp.lt.s32.totalorder %s19, 0
        %s156 = scalar_select %p155, %s19, 0
        %s157 = smul.addr %s154, 3
        %s158 = sadd.s32 %s156, %s157
        %s159 = smul.addr %s158, 8
        %s160 = scalar_lea.vmem %s1, %s159
        %p161 = pneg %p70
        %p162 = pneg %p67
        %p163 = pneg %p98
        %p164 = pneg %p95
        %p165 = scmp.lt.s32.totalorder %s18, 1
        %s166 = scalar_select %p165, %s18, 1
        %p167 = scmp.lt.s32.totalorder %s19, 0
        %s168 = scalar_select %p167, %s19, 0
        %s169 = smul.addr %s166, 4
        %s170 = sadd.s32 %s168, %s169
        %s171 = smul.addr %s170, 8
        %s172 = scalar_lea.vmem %s2, %s171
        %p173 = scmp.lt.s32.totalorder %s18, 1
        %s174 = scalar_select %p173, %s18, 1
        %p175 = scmp.lt.s32.totalorder %s19, 0
        %s176 = scalar_select %p175, %s19, 0
        %s177 = smul.addr %s174, 3
        %s178 = sadd.s32 %s176, %s177
        %s179 = smul.addr %s178, 8
        %s180 = scalar_lea.vmem %s1, %s179
        %p181 = scmp.lt.s32.totalorder %s18, 1
        %s182 = scalar_select %p181, %s18, 1
        %p183 = scmp.lt.s32.totalorder %s19, 0
        %s184 = scalar_select %p183, %s19, 0
        %s185 = smul.addr %s182, 4
        %s186 = sadd.s32 %s184, %s185
        %s187 = smul.addr %s186, 8
        %s188 = scalar_lea.vmem %s2, %s187
        %v189 = vld [vmem:[%s180] sm:$0xff]
        %s190 = scalar_lea.vmem %s180, 8
        %v191 = vld [vmem:[%s190] sm:$0xff]
        %v192 = vmax.f32 %v191, -20.0
        %v193 = vmin.f32 %v192, 30.0
        %v194 = vsub.f32 0.0, %v193
        %v195 = vmul.f32 %v194, 1.442695
        %v196 = vpow.pop %v195
        %s197 = scalar_lea.vmem %s180, 16
        %v198 = vld [vmem:[%s197] sm:$0xff]
        %v199 = vmax.f32 %v198, -20.0
        %v200 = vmin.f32 %v199, 30.0
        %v201 = vsub.f32 0.0, %v200
        %v202 = vmul.f32 %v201, 1.442695
        %v203 = vpow.pop %v202
        %s204 = smul.u32 %s18, 128
        %s205 = sld [smem:[#allocation2 + %s204]]
        %s206 = sadd.s32 %s204, 1
        %s207 = sld [smem:[#allocation2 + %s206]]
        %s208 = sadd.s32 %s204, 2
        %s209 = sld [smem:[#allocation2 + %s208]]
        %s210 = sadd.s32 %s204, 3
        %s211 = sld [smem:[#allocation2 + %s210]]
        %s212 = sadd.s32 %s204, 4
        %s213 = sld [smem:[#allocation2 + %s212]]
        %s214 = sadd.s32 %s204, 5
        %s215 = sld [smem:[#allocation2 + %s214]]
        %s216 = sadd.s32 %s204, 6
        %s217 = sld [smem:[#allocation2 + %s216]]
        %s218 = ssub.f32 0.0, %s209
        %v219 = vstv %s218
        %v220 = vmul.f32 %v219, %v196
        %v221 = vmul.f32 %v220, 1.442695
        %v222 = vpow.pop %v221
        %s223 = ssub.f32 0.0, %s207
        %v224 = vstv %s223
        %v225 = vmul.f32 %v224, %v196
        %v226 = vmul.f32 %v225, 1.442695
        %v227 = vpow.pop %v226
        %v228 = vmul.f32 %v222, 2.0
        %v229 = vadd.f32 %v227, 1.0
        %v230 = vrcp.pop %v229
        %v231 = vmul.f32 %v228, %v230
        %v232 = vsub.f32 1.0, %v231
        %v233 = vsub.f32 1.0, %v227
        %v234 = vsub.f32 1.0, %v228
        %v235 = vadd.f32 %v234, %v227
        %v236 = vstv %s213
        %v237 = vmul.f32 %v232, %v236
        %v238 = vstv %s215
        %v239 = vmul.f32 %v233, %v238
        %v240 = vadd.f32 %v237, %v239
        %v241 = vstv %s217
        %v242 = vmul.f32 %v235, %v241
        %v243 = vadd.f32 %v240, %v242
        %v244 = vstv %s211
        %v245 = vadd.f32 %v244, %v189
        %v246 = vstv %s205
        %v247 = vmul.f32 %v246, %v203
        %v248 = vsub.f32 %v245, %v247
        %v249 = vmul.f32 %v248, 1.442695
        %v250 = vpow.pop %v249
        %v251 = vmul.f32 %v250, %v243
        %252 = vst [vmem:[%s188] sm:$0xff] %v251
        %s253 = sadd.s32 %s204, 8
        %s254 = sld [smem:[#allocation2 + %s253]]
        %s255 = sadd.s32 %s204, 9
        %s256 = sld [smem:[#allocation2 + %s255]]
        %s257 = sadd.s32 %s204, 10
        %s258 = sld [smem:[#allocation2 + %s257]]
        %s259 = sadd.s32 %s204, 11
        %s260 = sld [smem:[#allocation2 + %s259]]
        %s261 = sadd.s32 %s204, 12
        %s262 = sld [smem:[#allocation2 + %s261]]
        %s263 = sadd.s32 %s204, 13
        %s264 = sld [smem:[#allocation2 + %s263]]
        %s265 = sadd.s32 %s204, 14
        %s266 = sld [smem:[#allocation2 + %s265]]
        %s267 = ssub.f32 0.0, %s258
        %v268 = vstv %s267
        %v269 = vmul.f32 %v268, %v196
        %v270 = vmul.f32 %v269, 1.442695
        %v271 = vpow.pop %v270
        %s272 = ssub.f32 0.0, %s256
        %v273 = vstv %s272
        %v274 = vmul.f32 %v273, %v196
        %v275 = vmul.f32 %v274, 1.442695
        %v276 = vpow.pop %v275
        %v277 = vmul.f32 %v271, 2.0
        %v278 = vadd.f32 %v276, 1.0
        %v279 = vrcp.pop %v278
        %v280 = vmul.f32 %v277, %v279
        %v281 = vsub.f32 1.0, %v280
        %v282 = vsub.f32 1.0, %v276
        %v283 = vsub.f32 1.0, %v277
        %v284 = vadd.f32 %v283, %v276
        %v285 = vstv %s262
        %v286 = vmul.f32 %v281, %v285
        %v287 = vstv %s264
        %v288 = vmul.f32 %v282, %v287
        %v289 = vadd.f32 %v286, %v288
        %v290 = vstv %s266
        %v291 = vmul.f32 %v284, %v290
        %v292 = vadd.f32 %v289, %v291
        %v293 = vstv %s260
        %v294 = vadd.f32 %v293, %v189
        %v295 = vstv %s254
        %v296 = vmul.f32 %v295, %v203
        %v297 = vsub.f32 %v294, %v296
        %v298 = vmul.f32 %v297, 1.442695
        %v299 = vpow.pop %v298
        %v300 = vmul.f32 %v299, %v292
        %s301 = scalar_lea.vmem %s188, 8
        %302 = vst [vmem:[%s301] sm:$0xff] %v300
        %s303 = sadd.s32 %s204, 16
        %s304 = sld [smem:[#allocation2 + %s303]]
        %s305 = sadd.s32 %s204, 17
        %s306 = sld [smem:[#allocation2 + %s305]]
        %s307 = sadd.s32 %s204, 18
        %s308 = sld [smem:[#allocation2 + %s307]]
        %s309 = sadd.s32 %s204, 19
        %s310 = sld [smem:[#allocation2 + %s309]]
        %s311 = sadd.s32 %s204, 20
        %s312 = sld [smem:[#allocation2 + %s311]]
        %s313 = sadd.s32 %s204, 21
        %s314 = sld [smem:[#allocation2 + %s313]]
        %s315 = sadd.s32 %s204, 22
        %s316 = sld [smem:[#allocation2 + %s315]]
        %s317 = ssub.f32 0.0, %s308
        %v318 = vstv %s317
        %v319 = vmul.f32 %v318, %v196
        %v320 = vmul.f32 %v319, 1.442695
        %v321 = vpow.pop %v320
        %s322 = ssub.f32 0.0, %s306
        %v323 = vstv %s322
        %v324 = vmul.f32 %v323, %v196
        %v325 = vmul.f32 %v324, 1.442695
        %v326 = vpow.pop %v325
        %v327 = vmul.f32 %v321, 2.0
        %v328 = vadd.f32 %v326, 1.0
        %v329 = vrcp.pop %v328
        %v330 = vmul.f32 %v327, %v329
        %v331 = vsub.f32 1.0, %v330
        %v332 = vsub.f32 1.0, %v326
        %v333 = vsub.f32 1.0, %v327
        %v334 = vadd.f32 %v333, %v326
        %v335 = vstv %s312
        %v336 = vmul.f32 %v331, %v335
        %v337 = vstv %s314
        %v338 = vmul.f32 %v332, %v337
        %v339 = vadd.f32 %v336, %v338
        %v340 = vstv %s316
        %v341 = vmul.f32 %v334, %v340
        %v342 = vadd.f32 %v339, %v341
        %v343 = vstv %s310
        %v344 = vadd.f32 %v343, %v189
        %v345 = vstv %s304
        %v346 = vmul.f32 %v345, %v203
        %v347 = vsub.f32 %v344, %v346
        %v348 = vmul.f32 %v347, 1.442695
        %v349 = vpow.pop %v348
        %v350 = vmul.f32 %v349, %v342
        %s351 = scalar_lea.vmem %s188, 16
        %352 = vst [vmem:[%s351] sm:$0xff] %v350
        %s353 = sadd.s32 %s204, 24
        %s354 = sld [smem:[#allocation2 + %s353]]
        %s355 = sadd.s32 %s204, 25
        %s356 = sld [smem:[#allocation2 + %s355]]
        %s357 = sadd.s32 %s204, 26
        %s358 = sld [smem:[#allocation2 + %s357]]
        %s359 = sadd.s32 %s204, 27
        %s360 = sld [smem:[#allocation2 + %s359]]
        %s361 = sadd.s32 %s204, 28
        %s362 = sld [smem:[#allocation2 + %s361]]
        %s363 = sadd.s32 %s204, 29
        %s364 = sld [smem:[#allocation2 + %s363]]
        %s365 = sadd.s32 %s204, 30
        %s366 = sld [smem:[#allocation2 + %s365]]
        %s367 = ssub.f32 0.0, %s358
        %v368 = vstv %s367
        %v369 = vmul.f32 %v368, %v196
        %v370 = vmul.f32 %v369, 1.442695
        %v371 = vpow.pop %v370
        %s372 = ssub.f32 0.0, %s356
        %v373 = vstv %s372
        %v374 = vmul.f32 %v373, %v196
        %v375 = vmul.f32 %v374, 1.442695
        %v376 = vpow.pop %v375
        %v377 = vmul.f32 %v371, 2.0
        %v378 = vadd.f32 %v376, 1.0
        %v379 = vrcp.pop %v378
        %v380 = vmul.f32 %v377, %v379
        %v381 = vsub.f32 1.0, %v380
        %v382 = vsub.f32 1.0, %v376
        %v383 = vsub.f32 1.0, %v377
        %v384 = vadd.f32 %v383, %v376
        %v385 = vstv %s362
        %v386 = vmul.f32 %v381, %v385
        %v387 = vstv %s364
        %v388 = vmul.f32 %v382, %v387
        %v389 = vadd.f32 %v386, %v388
        %v390 = vstv %s366
        %v391 = vmul.f32 %v384, %v390
        %v392 = vadd.f32 %v389, %v391
        %v393 = vstv %s360
        %v394 = vadd.f32 %v393, %v189
        %v395 = vstv %s354
        %v396 = vmul.f32 %v395, %v203
        %v397 = vsub.f32 %v394, %v396
        %v398 = vmul.f32 %v397, 1.442695
        %v399 = vpow.pop %v398
        %v400 = vmul.f32 %v399, %v392
        %s401 = scalar_lea.vmem %s188, 24
        %402 = vst [vmem:[%s401] sm:$0xff] %v400
        %p403 = scmp.lt.s32.totalorder %s18, 1
        %s404 = scalar_select %p403, %s18, 1
        %p405 = scmp.lt.s32.totalorder %s19, 0
        %s406 = scalar_select %p405, %s19, 0
        %s407 = smul.addr %s404, 4
        %s408 = sadd.s32 %s406, %s407
        %s409 = smul.addr %s408, 8
        %s410 = scalar_lea.vmem %s2, %s409
        // Predicated region
        $region33: #{mr_signal_model.1} parent=27 // pred_check
          %p411 = pneg %p95
        $region34: #{mr_signal_model.1} parent=27 // pred_check_branch
          %413 = sbr.rel (%p411) target = $region36
        $region35: #{mr_signal_model.1} parent=27 // pred_region
          _
        $region36: #{mr_signal_model.1} parent=27 // pred_fallthru
          _
      $region28: #{mr_signal_model.1} parent=5 // pred_fallthru
        _
      %p414 = scmp.le.s32.totalorder 2, %s9
      // Predicated region
      $region37: #{mr_signal_model.1} parent=5 // pred_check
        %p415 = pneg %p414
      $region38: #{mr_signal_model.1} parent=5 // pred_check_branch
        %417 = sbr.rel (%p415) target = $region40
      $region39: #{mr_signal_model.1} parent=5 // pred_region
        %s418 = ssub.s32 %s9, 2
        // Predicated region
        $region41: #{mr_signal_model.1} parent=39 // pred_check
          %p419 = pneg %p101
        $region42: #{mr_signal_model.1} parent=39 // pred_check_branch
          %421 = sbr.rel (%p419) target = $region44
        $region43: #{mr_signal_model.1} parent=39 // pred_region
          %p422 = scmp.lt.s32.totalorder %s20, 1
          %s423 = scalar_select %p422, %s20, 1
          %p424 = scmp.lt.s32.totalorder %s21, 0
          %s425 = scalar_select %p424, %s21, 0
          %s426 = smul.addr %s423, 4
          %s427 = sadd.s32 %s425, %s426
          %s428 = smul.addr %s427, 8
          %s429 = scalar_lea.vmem %s2, %s428
        $region44: #{mr_signal_model.1} parent=39 // pred_fallthru
          _
      $region40: #{mr_signal_model.1} parent=5 // pred_fallthru
        _
    $region6: #{mr_signal_model.1} parent=1 // loop_footer
      %s13 = sadd.s32 1, %s9
    $region7: #{mr_signal_model.1} parent=1 // loop_footer_branch
      %8 = sbr.rel target = $region3
    $region8: #{mr_signal_model.1} parent=1 // loop_exit
      _
    %430 = vsyncpa [#allocation3], 1
    %s431 = scalar_lea.sflag [#allocation3], 1
    %432 = vsyncpa %s431, 1

</llo_original>
